<compile_context>
chip_gen: v7x
topology: tpu7x:2x2x1
jax: 0.10.0
libtpu: 0.0.40
codegen_flags: <defaults>
</compile_context>

<pallas_src>
import functools

import jax
import jax.numpy as jnp
from jax.experimental import pallas as pl
from jax.experimental.pallas import tpu as pltpu

HIDDEN = 128      # fc1 / fc2 width (fixed by the PyTorch module)
LANE = 128        # TPU lane width
MAX_TB = 1024     # batch-tile cap (VMEM use stays ~a few hundred KB)


def _round_up(x, m):
    return (x + m - 1) // m * m


# ---------------------------------------------------------------------------
# Kernel
# ---------------------------------------------------------------------------
def actor_critic_kernel(
    state_ref,          # (TB, S_pad)        f32
    w1_ref, b1_ref,     # (S_pad, 128) f32, (1, 128) f32
    w2_ref, b2_ref,     # (128, 128)   f32, (1, 128) f32
    wht_ref, bht_ref,   # (H_T, 128)   f32, (H_T, 1) f32   fused [actor | critic | 0-pad], transposed
    out_ref,            # (H_T, TB)    f32   rows [:A]=tanh(actor), row A=critic, rest pad
    *, action_dim,
):
    x = state_ref[...]

    # fc1 + relu
    h1 = jnp.dot(x, w1_ref[...], preferred_element_type=jnp.float32) + b1_ref[...]
    h1 = jnp.maximum(h1, 0.0)

    # fc2 + relu
    h2 = jnp.dot(h1, w2_ref[...], preferred_element_type=jnp.float32) + b2_ref[...]
    h2 = jnp.maximum(h2, 0.0)

    # Fused actor+critic head, emitted transposed: (H_T, 128) . (TB, 128)^T -> (H_T, TB).
    # Lane-dense output (batch on lanes), ~16x less writeback than a (TB, 128) slab.
    head = jax.lax.dot_general(
        wht_ref[...], h2,
        dimension_numbers=(((1,), (1,)), ((), ())),
        preferred_element_type=jnp.float32,
    ) + bht_ref[...]

    # tanh only on the actor rows; the critic row (index action_dim) stays linear.
    row = jax.lax.broadcasted_iota(jnp.int32, head.shape, 0)
    out_ref[...] = jnp.where(row < action_dim, jnp.tanh(head), head).astype(out_ref.dtype)


# ---------------------------------------------------------------------------
# Parameter packing (PyTorch-layout f32 params -> kernel layout)
# ---------------------------------------------------------------------------
def prepare_kernel_params(params, state_dim, action_dim):
    """Pad / fuse the f32 params into the layout the kernel expects."""
    s_pad = _round_up(state_dim, 8)          # f32 sublane granule for w1 rows
    head_t = _round_up(action_dim + 1, 8)    # fused head rows: actor + critic, sublane-aligned

    w1 = jnp.zeros((s_pad, HIDDEN), jnp.float32).at[:state_dim, :].set(params["w1"])

    # Transposed fused head: rows 0..A-1 = actor, row A = critic, rest zero.
    wht = jnp.zeros((head_t, HIDDEN), jnp.float32)
    wht = wht.at[:action_dim, :].set(params["wa"].T)
    wht = wht.at[action_dim, :].set(params["wc"][:, 0])

    bht = jnp.zeros((head_t, 1), jnp.float32)
    bht = bht.at[:action_dim, 0].set(params["ba"][0, :])
    bht = bht.at[action_dim, 0].set(params["bc"][0, 0])

    return dict(
        w1=w1,
        b1=params["b1"].astype(jnp.float32),
        w2=params["w2"].astype(jnp.float32),
        b2=params["b2"].astype(jnp.float32),
        wht=wht,
        bht=bht,
    )


# ---------------------------------------------------------------------------
# Wrapper
# ---------------------------------------------------------------------------
def _choose_batch_tile(batch):
    """Pick the batch tile: big (amortize per-step overhead), lane-aligned on the
    multi-tile path, and >= 2 grid steps whenever possible (v7x megacore)."""
    if batch < LANE:
        return batch                              # single full-dim tile, grid = 1
    tb = min(MAX_TB, (batch // LANE) * LANE)      # multiple of 128, <= batch
    if pl.cdiv(batch, tb) < 2 and batch >= 2 * LANE:
        tb = _round_up(pl.cdiv(batch, 2), LANE)   # force grid == 2 for the 2 TCs
    return tb


def actor_critic_forward(state, kparams, action_dim):
    """state: (B, state_dim) f32. kparams: output of prepare_kernel_params."""
    B, S = state.shape
    s_pad = kparams["w1"].shape[0]
    head_t = kparams["wht"].shape[0]

    # Pad only the (tiny) feature dim; the batch dim is handled by the grid.
    if S != s_pad:
        state = jnp.pad(state, ((0, 0), (0, s_pad - S)))

    TB = _choose_batch_tile(B)
    grid = pl.cdiv(B, TB)

    pinned = lambda i: (0, 0)      # weights/biases resident across the batch grid

    out = pl.pallas_call(
        functools.partial(actor_critic_kernel, action_dim=action_dim),
        out_shape=jax.ShapeDtypeStruct((head_t, B), jnp.float32),
        grid_spec=pltpu.PrefetchScalarGridSpec(
            num_scalar_prefetch=0,
            grid=(grid,),
            in_specs=[
                pl.BlockSpec((TB, s_pad), lambda i: (i, 0)),     # state
                pl.BlockSpec((s_pad, HIDDEN), pinned),           # w1
                pl.BlockSpec((1, HIDDEN), pinned),               # b1
                pl.BlockSpec((HIDDEN, HIDDEN), pinned),          # w2
                pl.BlockSpec((1, HIDDEN), pinned),               # b2
                pl.BlockSpec((head_t, HIDDEN), pinned),          # wht (fused heads, transposed)
                pl.BlockSpec((head_t, 1), pinned),               # bht
            ],
            out_specs=pl.BlockSpec((head_t, TB), lambda i: (0, i)),
        ),
        compiler_params=pltpu.CompilerParams(
            dimension_semantics=("parallel",),
        ),
    )(state, kparams["w1"], kparams["b1"], kparams["w2"], kparams["b2"],
      kparams["wht"], kparams["bht"])

    action_logits = out[:action_dim, :].T                  # (B, action_dim)
    state_value = out[action_dim:action_dim + 1, :].T      # (B, 1)
    return action_logits, state_value


# ---------------------------------------------------------------------------
# Init + reference
# ---------------------------------------------------------------------------
def init_params(key, state_dim, action_dim):
    """Synthetic init matching PyTorch Linear shapes (stored transposed: in x out)."""
    ks = jax.random.split(key, 8)

    def lin(kw, kb, fan_in, fan_out):
        bound = 1.0 / jnp.sqrt(jnp.float32(fan_in))
        w = jax.random.uniform(kw, (fan_in, fan_out), jnp.float32, -bound, bound)
        b = jax.random.uniform(kb, (1, fan_out), jnp.float32, -bound, bound)
        return w, b

    w1, b1 = lin(ks[0], ks[1], state_dim, HIDDEN)
    w2, b2 = lin(ks[2], ks[3], HIDDEN, HIDDEN)
    wa, ba = lin(ks[4], ks[5], HIDDEN, action_dim)
    wc, bc = lin(ks[6], ks[7], HIDDEN, 1)
    return dict(w1=w1, b1=b1, w2=w2, b2=b2, wa=wa, ba=ba, wc=wc, bc=bc)


def reference_forward(state, p):
    x = jnp.maximum(state @ p["w1"] + p["b1"], 0.0)
    x = jnp.maximum(x @ p["w2"] + p["b2"], 0.0)
    return jnp.tanh(x @ p["wa"] + p["ba"]), x @ p["wc"] + p["bc"]


# ---------------------------------------------------------------------------
# Demo / self-test
# ---------------------------------------------------------------------------
if __name__ == "__main__":
    # 7-DOF arm: action_dim = 7; small synthetic state_dim = 17
    STATE_DIM, ACTION_DIM = 17, 7

    key = jax.random.PRNGKey(0)
    k_params, k_small, k_big = jax.random.split(key, 3)

    params = init_params(k_params, STATE_DIM, ACTION_DIM)
    kparams = prepare_kernel_params(params, STATE_DIM, ACTION_DIM)

    # (1) small batch (grid = 1)   (2) multi-tile batch (grid = 2, exercises the
    # lane-aligned batch tiling / megacore path)
    for name, batch, k in (("small", 4, k_small), ("multi_tile", 256, k_big)):
        state = jax.random.normal(k, (batch, STATE_DIM), dtype=jnp.float32)

        logits, value = actor_critic_forward(state, kparams, ACTION_DIM)
        jax.block_until_ready((logits, value))

        assert logits.shape == (batch, ACTION_DIM), name
        assert value.shape == (batch, 1), name

        ref_l, ref_v = reference_forward(state, params)
        assert jnp.allclose(logits, ref_l, atol=2e-2, rtol=2e-2), name
        assert jnp.allclose(value, ref_v, atol=2e-2, rtol=2e-2), name

    print("KERNEL_OK")
</pallas_src>

<mosaic_0001>
module attributes {stable_mosaic.version = 11 : i64} {
  func.func @actor_critic_kernel(%arg0: i32, %arg1: memref<4x24xf32, #tpu.memory_space<vmem>>, %arg2: memref<24x128xf32, #tpu.memory_space<vmem>>, %arg3: memref<1x128xf32, #tpu.memory_space<vmem>>, %arg4: memref<128x128xf32, #tpu.memory_space<vmem>>, %arg5: memref<1x128xf32, #tpu.memory_space<vmem>>, %arg6: memref<8x128xf32, #tpu.memory_space<vmem>>, %arg7: memref<8x1xf32, #tpu.memory_space<vmem>>, %arg8: memref<8x4xf32, #tpu.memory_space<vmem>>) attributes {dimension_semantics = [#tpu.dimension_semantics<parallel>], iteration_bounds = array<i64: 1>, scalar_prefetch = 0 : i64, scratch_operands = 0 : i64, tpu.core_type = #tpu.core_type<tc>, window_params = [{transform_indices = @transform_0, window_bounds = array<i64: 4, 24>}, {pipeline_mode = #tpu.pipeline_mode<synchronous>, transform_indices = @transform_1, window_bounds = array<i64: 24, 128>}, {pipeline_mode = #tpu.pipeline_mode<synchronous>, transform_indices = @transform_2, window_bounds = array<i64: 1, 128>}, {pipeline_mode = #tpu.pipeline_mode<synchronous>, transform_indices = @transform_3, window_bounds = array<i64: 128, 128>}, {pipeline_mode = #tpu.pipeline_mode<synchronous>, transform_indices = @transform_4, window_bounds = array<i64: 1, 128>}, {pipeline_mode = #tpu.pipeline_mode<synchronous>, transform_indices = @transform_5, window_bounds = array<i64: 8, 128>}, {pipeline_mode = #tpu.pipeline_mode<synchronous>, transform_indices = @transform_6, window_bounds = array<i64: 8, 1>}, {transform_indices = @transform_7, window_bounds = array<i64: 8, 4>}]} {
    %c0 = arith.constant 0 : index
    %c0_0 = arith.constant 0 : index
    %0 = vector.load %arg1[%c0, %c0_0] : memref<4x24xf32, #tpu.memory_space<vmem>>, vector<4x24xf32>
    %c0_1 = arith.constant 0 : index
    %c0_2 = arith.constant 0 : index
    %1 = vector.load %arg2[%c0_1, %c0_2] : memref<24x128xf32, #tpu.memory_space<vmem>>, vector<24x128xf32>
    %cst = arith.constant dense<0.000000e+00> : vector<4x128xf32>
    %2 = tpu.matmul %0, %1, %cst {dimension_numbers = #tpu.dot_dimension_numbers<[1], [0], [0], [1], [0, 0, 1, 1], [], []>} : vector<4x24xf32>, vector<24x128xf32>, vector<4x128xf32> -> vector<4x128xf32>
    %c0_3 = arith.constant 0 : index
    %c0_4 = arith.constant 0 : index
    %3 = vector.load %arg3[%c0_3, %c0_4] : memref<1x128xf32, #tpu.memory_space<vmem>>, vector<1x128xf32>
    %4 = vector.broadcast %3 : vector<1x128xf32> to vector<4x128xf32>
    %5 = arith.addf %2, %4 : vector<4x128xf32>
    %cst_5 = arith.constant 0.000000e+00 : f32
    %6 = vector.broadcast %cst_5 : f32 to vector<4x128xf32>
    %7 = arith.maximumf %5, %6 : vector<4x128xf32>
    %c0_6 = arith.constant 0 : index
    %c0_7 = arith.constant 0 : index
    %8 = vector.load %arg4[%c0_6, %c0_7] : memref<128x128xf32, #tpu.memory_space<vmem>>, vector<128x128xf32>
    %cst_8 = arith.constant dense<0.000000e+00> : vector<4x128xf32>
    %9 = tpu.matmul %7, %8, %cst_8 {dimension_numbers = #tpu.dot_dimension_numbers<[1], [0], [0], [1], [0, 0, 1, 1], [], []>} : vector<4x128xf32>, vector<128x128xf32>, vector<4x128xf32> -> vector<4x128xf32>
    %c0_9 = arith.constant 0 : index
    %c0_10 = arith.constant 0 : index
    %10 = vector.load %arg5[%c0_9, %c0_10] : memref<1x128xf32, #tpu.memory_space<vmem>>, vector<1x128xf32>
    %11 = vector.broadcast %10 : vector<1x128xf32> to vector<4x128xf32>
    %12 = arith.addf %9, %11 : vector<4x128xf32>
    %cst_11 = arith.constant 0.000000e+00 : f32
    %13 = vector.broadcast %cst_11 : f32 to vector<4x128xf32>
    %14 = arith.maximumf %12, %13 : vector<4x128xf32>
    %c0_12 = arith.constant 0 : index
    %c0_13 = arith.constant 0 : index
    %15 = vector.load %arg6[%c0_12, %c0_13] : memref<8x128xf32, #tpu.memory_space<vmem>>, vector<8x128xf32>
    %cst_14 = arith.constant dense<0.000000e+00> : vector<8x4xf32>
    %16 = tpu.matmul %15, %14, %cst_14 {dimension_numbers = #tpu.dot_dimension_numbers<[1], [1], [0], [0], [0, 0, 1, 0], [], []>} : vector<8x128xf32>, vector<4x128xf32>, vector<8x4xf32> -> vector<8x4xf32>
    %c0_15 = arith.constant 0 : index
    %c0_16 = arith.constant 0 : index
    %17 = vector.load %arg7[%c0_15, %c0_16] : memref<8x1xf32, #tpu.memory_space<vmem>>, vector<8x1xf32>
    %18 = vector.broadcast %17 : vector<8x1xf32> to vector<8x4xf32>
    %19 = arith.addf %16, %18 : vector<8x4xf32>
    %20 = tpu.iota {dimensions = array<i32: 0>} : vector<8x4xi32>
    %c7_i32 = arith.constant 7 : i32
    %21 = vector.broadcast %c7_i32 : i32 to vector<8x4xi32>
    %22 = arith.cmpi slt, %20, %21 : vector<8x4xi32>
    %23 = math.tanh %19 : vector<8x4xf32>
    %24 = arith.select %22, %23, %19 : vector<8x4xi1>, vector<8x4xf32>
    %c0_17 = arith.constant 0 : index
    %c0_18 = arith.constant 0 : index
    %25 = vector.load %arg8[%c0_17, %c0_18] : memref<8x4xf32, #tpu.memory_space<vmem>>, vector<8x4xf32>
    tpu.vector_store %arg8[%c0_17, %c0_18], %24 {strides = array<i32>} : memref<8x4xf32, #tpu.memory_space<vmem>>, vector<8x4xf32>,
    return
  }
  func.func @transform_0(%arg0: i32) -> (i32, i32) {
    %c0_i32 = arith.constant 0 : i32
    %c0_i32_0 = arith.constant 0 : i32
    return %arg0, %c0_i32 : i32, i32
  }
  func.func @transform_1(%arg0: i32) -> (i32, i32) {
    %c0_i32 = arith.constant 0 : i32
    %c0_i32_0 = arith.constant 0 : i32
    %c0_i32_1 = arith.constant 0 : i32
    return %c0_i32, %c0_i32_0 : i32, i32
  }
  func.func @transform_2(%arg0: i32) -> (i32, i32) {
    %c0_i32 = arith.constant 0 : i32
    %c0_i32_0 = arith.constant 0 : i32
    %c0_i32_1 = arith.constant 0 : i32
    return %c0_i32, %c0_i32_0 : i32, i32
  }
  func.func @transform_3(%arg0: i32) -> (i32, i32) {
    %c0_i32 = arith.constant 0 : i32
    %c0_i32_0 = arith.constant 0 : i32
    %c0_i32_1 = arith.constant 0 : i32
    return %c0_i32, %c0_i32_0 : i32, i32
  }
  func.func @transform_4(%arg0: i32) -> (i32, i32) {
    %c0_i32 = arith.constant 0 : i32
    %c0_i32_0 = arith.constant 0 : i32
    %c0_i32_1 = arith.constant 0 : i32
    return %c0_i32, %c0_i32_0 : i32, i32
  }
  func.func @transform_5(%arg0: i32) -> (i32, i32) {
    %c0_i32 = arith.constant 0 : i32
    %c0_i32_0 = arith.constant 0 : i32
    %c0_i32_1 = arith.constant 0 : i32
    return %c0_i32, %c0_i32_0 : i32, i32
  }
  func.func @transform_6(%arg0: i32) -> (i32, i32) {
    %c0_i32 = arith.constant 0 : i32
    %c0_i32_0 = arith.constant 0 : i32
    %c0_i32_1 = arith.constant 0 : i32
    return %c0_i32, %c0_i32_0 : i32, i32
  }
  func.func @transform_7(%arg0: i32) -> (i32, i32) {
    %c0_i32 = arith.constant 0 : i32
    %c0_i32_0 = arith.constant 0 : i32
    return %c0_i32, %arg0 : i32, i32
  }
}

</mosaic_0001>

<llo_original>
// kernel: tpu_custom_call.1
$region0: #{tpu_custom_call.1}
  #allocation0 [shape = 'u32[]', space=smem, size = 0x4, offset = 0x4, fixed_abs, tag = 'smem constant byte address 0x4 - core index']
  #allocation1 [shape = 'u32[144,128]{1,0:T(1,128)}', space=vmem, size = 0x12000, scoped, tag = 'internal scratch']
  %s0 = inlined_call_operand.vmem [shape: f32[4,24], index: 0, kind: input, shape index: {}]
  %s1 = inlined_call_operand.hbm [shape: f32[24,128], index: 1, kind: input, shape index: {}]
  %s2 = inlined_call_operand.vmem [shape: f32[1,128], index: 2, kind: input, shape index: {}]
  %s3 = inlined_call_operand.hbm [shape: f32[128,128], index: 3, kind: input, shape index: {}]
  %s4 = inlined_call_operand.vmem [shape: f32[1,128], index: 4, kind: input, shape index: {}]
  %s5 = inlined_call_operand.vmem [shape: f32[8,128], index: 5, kind: input, shape index: {}]
  %s6 = inlined_call_operand.vmem [shape: f32[8,1], index: 6, kind: input, shape index: {}]
  %s7 = inlined_call_operand.vmem [shape: f32[8,4], index: 7, kind: output, shape index: {}]
  %s8 = sld [smem:[#allocation0]]
  $region46: #{tpu_custom_call.1} parent=0
    _
  %s10 = ssub.s32 1, %s8
  %s11 = scalar_select 0, %s10, %s8
  $region1: #{tpu_custom_call.1} parent=0
    #allocation2 [shape = 'u8[12288]{0}', space=vmem, size = 0x3000, scoped, tag = 'input window, operand 1, single buffered']
    #allocation3 [shape = 's32[1]{0}', space=sflag, size = 0x4, scoped, tag = 'scoped memory for tpu_custom_call.1']
    #allocation4 [shape = 'u8[65536]{0}', space=vmem, size = 0x10000, scoped, tag = 'input window, operand 3, single buffered']
    #allocation5 [shape = 's32[1]{0}', space=sflag, size = 0x4, scoped, tag = 'scoped memory for tpu_custom_call.1']
    %12 = vsyncpa [#allocation3], 0
    %13 = vsyncpa [#allocation5], 0
    // Predicated region
    $region2: #{tpu_custom_call.1} parent=1 // pred_check
      _
    $region3: #{tpu_custom_call.1} parent=1 // pred_check_branch
      %15 = sbr.rel (0) target = $region5
    $region4: #{tpu_custom_call.1} parent=1 // pred_region
      _
    $region5: #{tpu_custom_call.1} parent=1 // pred_fallthru
      _
    // Predicated region
    $region6: #{tpu_custom_call.1} parent=1 // pred_check
      _
    $region7: #{tpu_custom_call.1} parent=1 // pred_check_branch
      %17 = sbr.rel (0) target = $region9
    $region8: #{tpu_custom_call.1} parent=1 // pred_region
      %s19 = ssub.s32 384, 384
      %20 = vsyncadd [#allocation3], %s19
      %s21 = sshll.u32 [#allocation2], 4
      %s22 = int_to_ptr.vmem [resolvable:$true] %s21
      %27 = dma.hbm_to_vmem [thread:$0]  %s1, 384, %s22, [#allocation3], 128, 128, 8
    $region9: #{tpu_custom_call.1} parent=1 // pred_fallthru
      _
    // Predicated region
    $region10: #{tpu_custom_call.1} parent=1 // pred_check
      _
    $region11: #{tpu_custom_call.1} parent=1 // pred_check_branch
      %29 = sbr.rel (0) target = $region13
    $region12: #{tpu_custom_call.1} parent=1 // pred_region
      _
    $region13: #{tpu_custom_call.1} parent=1 // pred_fallthru
      _
    // Predicated region
    $region14: #{tpu_custom_call.1} parent=1 // pred_check
      _
    $region15: #{tpu_custom_call.1} parent=1 // pred_check_branch
      %31 = sbr.rel (0) target = $region17
    $region16: #{tpu_custom_call.1} parent=1 // pred_region
      %s33 = ssub.s32 2048, 2048
      %34 = vsyncadd [#allocation5], %s33
      %s35 = sshll.u32 [#allocation4], 4
      %s36 = int_to_ptr.vmem [resolvable:$true] %s35
      %41 = dma.hbm_to_vmem [thread:$0]  %s3, 2048, %s36, [#allocation5], 128, 128, 8
    $region17: #{tpu_custom_call.1} parent=1 // pred_fallthru
      _
    // Predicated region
    $region18: #{tpu_custom_call.1} parent=1 // pred_check
      _
    $region19: #{tpu_custom_call.1} parent=1 // pred_check_branch
      %43 = sbr.rel (0) target = $region21
    $region20: #{tpu_custom_call.1} parent=1 // pred_region
      _
    $region21: #{tpu_custom_call.1} parent=1 // pred_fallthru
      _
    // Predicated region
    $region22: #{tpu_custom_call.1} parent=1 // pred_check
      _
    $region23: #{tpu_custom_call.1} parent=1 // pred_check_branch
      %45 = sbr.rel (0) target = $region25
    $region24: #{tpu_custom_call.1} parent=1 // pred_region
      _
    $region25: #{tpu_custom_call.1} parent=1 // pred_fallthru
      _
    // Predicated region
    $region26: #{tpu_custom_call.1} parent=1 // pred_check
      _
    $region27: #{tpu_custom_call.1} parent=1 // pred_check_branch
      %47 = sbr.rel (0) target = $region29
    $region28: #{tpu_custom_call.1} parent=1 // pred_region
      _
    $region29: #{tpu_custom_call.1} parent=1 // pred_fallthru
      _
    // Predicated region
    $region30: #{tpu_custom_call.1} parent=1 // pred_check
      _
    $region31: #{tpu_custom_call.1} parent=1 // pred_check_branch
      %49 = sbr.rel (0) target = $region33
    $region32: #{tpu_custom_call.1} parent=1 // pred_region
      %50 = dma.done [#allocation3], 384
    $region33: #{tpu_custom_call.1} parent=1 // pred_fallthru
      _
    // Predicated region
    $region34: #{tpu_custom_call.1} parent=1 // pred_check
      _
    $region35: #{tpu_custom_call.1} parent=1 // pred_check_branch
      %52 = sbr.rel (0) target = $region37
    $region36: #{tpu_custom_call.1} parent=1 // pred_region
      %53 = dma.done [#allocation5], 2048
    $region37: #{tpu_custom_call.1} parent=1 // pred_fallthru
      _
    %v54 = vld [vmem:[%s0] sm:$0xf]
    %v55 = vld [vmem:[#allocation2] sm:$0xff]
    %v56 = vld [vmem:[#allocation2 + $0x8] sm:$0xff]
    %v57 = vld [vmem:[#allocation2 + $0x10] sm:$0xff]
    %v58 = vld [vmem:[%s2] sm:$0x1]
    %v60 = vlaneseq
    %v61 = vshrl.u32 %v60, 7
    %v62 = vsub.s32 0, %v61
    %v63 = vrot.slane %v58, %v62
    %vm65 = vcmask 195584
    %v67 = vsel %vm65, %v54, 0
    %69 = vmatprep.subr.mxu0 0.0
    %70 = vmatpush1.msra.mxu0 %v55
    %71 = vmatprep.subr.mxu0 0.0
    %72 = vmatpush1.msra.mxu0 %v56
    %73 = vmatprep.subr.mxu0 0.0
    %74 = vmatpush1.msra.mxu0 %v57
    %75 = vmatprep.subr.mxu0 0.0
    %76 = vmatpush1.msra.mxu0 0.0
    %77 = vmatprep.subr.mxu0 0.0
    %78 = vmatpush1.msra.mxu0 0.0
    %79 = vmatprep.subr.mxu0 0.0
    %80 = vmatpush1.msra.mxu0 0.0
    %81 = vmatprep.subr.mxu0 0.0
    %82 = vmatpush1.msra.mxu0 0.0
    %83 = vmatprep.subr.mxu0 0.0
    %84 = vmatpush1.msra.mxu0 0.0
    %85 = vmatprep.subr.mxu0 0.0
    %86 = vmatpush1.msra.mxu0 0.0
    %87 = vmatprep.subr.mxu0 0.0
    %88 = vmatpush1.msra.mxu0 0.0
    %89 = vmatprep.subr.mxu0 0.0
    %90 = vmatpush1.msra.mxu0 0.0
    %91 = vmatprep.subr.mxu0 0.0
    %92 = vmatpush1.msra.mxu0 0.0
    %93 = vmatprep.subr.mxu0 0.0
    %94 = vmatpush1.msra.mxu0 0.0
    %95 = vmatprep.subr.mxu0 0.0
    %96 = vmatpush1.msra.mxu0 0.0
    %97 = vmatprep.subr.mxu0 0.0
    %98 = vmatpush1.msra.mxu0 0.0
    %99 = vmatprep.subr.mxu0 0.0
    %100 = vmatpush1.msra.mxu0 0.0
    %101 = vmatprep.subr.mxu0 0.0
    %102 = vmatpush1.msra.mxu0 0.0
    %103 = vmatprep.subr.mxu0 0.0
    %104 = vmatpush1.msra.mxu0 0.0
    %105 = vmatprep.subr.mxu0 0.0
    %106 = vmatpush1.msra.mxu0 0.0
    %107 = vmatprep.subr.mxu0 0.0
    %108 = vmatpush1.msra.mxu0 0.0
    %109 = vmatprep.subr.mxu0 0.0
    %110 = vmatpush1.msra.mxu0 0.0
    %111 = vmatprep.subr.mxu0 0.0
    %112 = vmatpush1.msra.mxu0 0.0
    %113 = vmatprep.subr.mxu0 0.0
    %114 = vmatpush1.msra.mxu0 0.0
    %115 = vmatprep.subr.mxu0 0.0
    %116 = vmatpush1.msra.mxu0 0.0
    %117 = vmatprep.subr.mxu0 0.0
    %118 = vmatpush1.msra.mxu0 0.0
    %119 = vmatprep.subr.mxu0 0.0
    %120 = vmatpush1.msra.mxu0 0.0
    %121 = vmatprep.subr.mxu0 0.0
    %122 = vmatpush1.msra.mxu0 0.0
    %123 = vmatprep.subr.mxu0 0.0
    %124 = vmatpush1.msra.mxu0 0.0
    %125 = vmatprep.subr.mxu0 0.0
    %126 = vmatpush1.msra.mxu0 0.0
    %127 = vmatprep.subr.mxu0 0.0
    %128 = vmatpush1.msra.mxu0 0.0
    %129 = vmatprep.subr.mxu0 0.0
    %130 = vmatpush1.msra.mxu0 0.0
    %131 = vmatprep.subr.mxu0 0.0
    %132 = vmatpush1.msra.mxu0 0.0
    %133 = vmatprep.mubr.f32.mxu0 0.0
    %134 = vmatmul.mubr.f32.gmra.mrb[0].mxu0 %v67
    %v135 = vpop.f32.mrb[0].mxu0
    %v136 = vadd.f32 %v63, %v135
    %v137 = vpop.f32.mrb[0].mxu0
    %138 = vdwg.mxu0
    %v139 = vmax.f32 %v136, 0.0
    %v140 = vld [vmem:[#allocation4] sm:$0xff]
    %v141 = vld [vmem:[#allocation4 + $0x8] sm:$0xff]
    %v142 = vld [vmem:[#allocation4 + $0x10] sm:$0xff]
    %v143 = vld [vmem:[#allocation4 + $0x18] sm:$0xff]
    %v144 = vld [vmem:[#allocation4 + $0x20] sm:$0xff]
    %v145 = vld [vmem:[#allocation4 + $0x28] sm:$0xff]
    %v146 = vld [vmem:[#allocation4 + $0x30] sm:$0xff]
    %v147 = vld [vmem:[#allocation4 + $0x38] sm:$0xff]
    %v148 = vld [vmem:[#allocation4 + $0x40] sm:$0xff]
    %v149 = vld [vmem:[#allocation4 + $0x48] sm:$0xff]
    %v150 = vld [vmem:[#allocation4 + $0x50] sm:$0xff]
    %v151 = vld [vmem:[#allocation4 + $0x58] sm:$0xff]
    %v152 = vld [vmem:[#allocation4 + $0x60] sm:$0xff]
    %v153 = vld [vmem:[#allocation4 + $0x68] sm:$0xff]
    %v154 = vld [vmem:[#allocation4 + $0x70] sm:$0xff]
    %v155 = vld [vmem:[#allocation4 + $0x78] sm:$0xff]
    %v156 = vld [vmem:[%s4] sm:$0x1]
    %v158 = vlaneseq
    %v159 = vshrl.u32 %v158, 7
    %v160 = vsub.s32 0, %v159
    %v161 = vrot.slane %v156, %v160
    %163 = vmatprep.subr.mxu0 0.0
    %164 = vmatpush1.msra.mxu0 %v140
    %165 = vmatprep.subr.mxu0 0.0
    %166 = vmatpush1.msra.mxu0 %v141
    %167 = vmatprep.subr.mxu0 0.0
    %168 = vmatpush1.msra.mxu0 %v142
    %169 = vmatprep.subr.mxu0 0.0
    %170 = vmatpush1.msra.mxu0 %v143
    %171 = vmatprep.subr.mxu0 0.0
    %172 = vmatpush1.msra.mxu0 %v144
    %173 = vmatprep.subr.mxu0 0.0
    %174 = vmatpush1.msra.mxu0 %v145
    %175 = vmatprep.subr.mxu0 0.0
    %176 = vmatpush1.msra.mxu0 %v146
    %177 = vmatprep.subr.mxu0 0.0
    %178 = vmatpush1.msra.mxu0 %v147
    %179 = vmatprep.subr.mxu0 0.0
    %180 = vmatpush1.msra.mxu0 %v148
    %181 = vmatprep.subr.mxu0 0.0
    %182 = vmatpush1.msra.mxu0 %v149
    %183 = vmatprep.subr.mxu0 0.0
    %184 = vmatpush1.msra.mxu0 %v150
    %185 = vmatprep.subr.mxu0 0.0
    %186 = vmatpush1.msra.mxu0 %v151
    %187 = vmatprep.subr.mxu0 0.0
    %188 = vmatpush1.msra.mxu0 %v152
    %189 = vmatprep.subr.mxu0 0.0
    %190 = vmatpush1.msra.mxu0 %v153
    %191 = vmatprep.subr.mxu0 0.0
    %192 = vmatpush1.msra.mxu0 %v154
    %193 = vmatprep.subr.mxu0 0.0
    %194 = vmatpush1.msra.mxu0 %v155
    %195 = vmatprep.subr.mxu0 0.0
    %196 = vmatpush1.msra.mxu0 0.0
    %197 = vmatprep.subr.mxu0 0.0
    %198 = vmatpush1.msra.mxu0 0.0
    %199 = vmatprep.subr.mxu0 0.0
    %200 = vmatpush1.msra.mxu0 0.0
    %201 = vmatprep.subr.mxu0 0.0
    %202 = vmatpush1.msra.mxu0 0.0
    %203 = vmatprep.subr.mxu0 0.0
    %204 = vmatpush1.msra.mxu0 0.0
    %205 = vmatprep.subr.mxu0 0.0
    %206 = vmatpush1.msra.mxu0 0.0
    %207 = vmatprep.subr.mxu0 0.0
    %208 = vmatpush1.msra.mxu0 0.0
    %209 = vmatprep.subr.mxu0 0.0
    %210 = vmatpush1.msra.mxu0 0.0
    %211 = vmatprep.subr.mxu0 0.0
    %212 = vmatpush1.msra.mxu0 0.0
    %213 = vmatprep.subr.mxu0 0.0
    %214 = vmatpush1.msra.mxu0 0.0
    %215 = vmatprep.subr.mxu0 0.0
    %216 = vmatpush1.msra.mxu0 0.0
    %217 = vmatprep.subr.mxu0 0.0
    %218 = vmatpush1.msra.mxu0 0.0
    %219 = vmatprep.subr.mxu0 0.0
    %220 = vmatpush1.msra.mxu0 0.0
    %221 = vmatprep.subr.mxu0 0.0
    %222 = vmatpush1.msra.mxu0 0.0
    %223 = vmatprep.subr.mxu0 0.0
    %224 = vmatpush1.msra.mxu0 0.0
    %225 = vmatprep.subr.mxu0 0.0
    %226 = vmatpush1.msra.mxu0 0.0
    %227 = vmatprep.mubr.f32.mxu0 0.0
    %228 = vmatmul.mubr.f32.gmra.mrb[0].mxu0 %v139
    %v229 = vpop.f32.mrb[0].mxu0
    %v230 = vadd.f32 %v161, %v229
    %v231 = vpop.f32.mrb[0].mxu0
    %232 = vdwg.mxu0
    %v233 = vmax.f32 %v230, 0.0
    %v234 = vld [vmem:[%s5] sm:$0xff]
    %v235 = vld [vmem:[%s6] sm:$0xff]
    %237 = vset.pattern.permute.xlu0 0
    %238 = vperm.xlu0 %237, %v235
    %v239 = vpop.permute.xlu0 %238
    %241 = vmatprep.subr.mxu0 0.0
    %242 = vmatpush1.xpose.msra.mxu0 %v233
    %243 = vmatprep.subr.mxu0 0.0
    %244 = vmatpush1.xpose.msra.mxu0 0.0
    %245 = vmatprep.subr.mxu0 0.0
    %246 = vmatpush1.xpose.msra.mxu0 0.0
    %247 = vmatprep.subr.mxu0 0.0
    %248 = vmatpush1.xpose.msra.mxu0 0.0
    %249 = vmatprep.subr.mxu0 0.0
    %250 = vmatpush1.xpose.msra.mxu0 0.0
    %251 = vmatprep.subr.mxu0 0.0
    %252 = vmatpush1.xpose.msra.mxu0 0.0
    %253 = vmatprep.subr.mxu0 0.0
    %254 = vmatpush1.xpose.msra.mxu0 0.0
    %255 = vmatprep.subr.mxu0 0.0
    %256 = vmatpush1.xpose.msra.mxu0 0.0
    %257 = vmatprep.subr.mxu0 0.0
    %258 = vmatpush1.xpose.msra.mxu0 0.0
    %259 = vmatprep.subr.mxu0 0.0
    %260 = vmatpush1.xpose.msra.mxu0 0.0
    %261 = vmatprep.subr.mxu0 0.0
    %262 = vmatpush1.xpose.msra.mxu0 0.0
    %263 = vmatprep.subr.mxu0 0.0
    %264 = vmatpush1.xpose.msra.mxu0 0.0
    %265 = vmatprep.subr.mxu0 0.0
    %266 = vmatpush1.xpose.msra.mxu0 0.0
    %267 = vmatprep.subr.mxu0 0.0
    %268 = vmatpush1.xpose.msra.mxu0 0.0
    %269 = vmatprep.subr.mxu0 0.0
    %270 = vmatpush1.xpose.msra.mxu0 0.0
    %271 = vmatprep.subr.mxu0 0.0
    %272 = vmatpush1.xpose.msra.mxu0 0.0
    %273 = vmatprep.subr.mxu0 0.0
    %274 = vmatpush1.xpose.msra.mxu0 0.0
    %275 = vmatprep.subr.mxu0 0.0
    %276 = vmatpush1.xpose.msra.mxu0 0.0
    %277 = vmatprep.subr.mxu0 0.0
    %278 = vmatpush1.xpose.msra.mxu0 0.0
    %279 = vmatprep.subr.mxu0 0.0
    %280 = vmatpush1.xpose.msra.mxu0 0.0
    %281 = vmatprep.subr.mxu0 0.0
    %282 = vmatpush1.xpose.msra.mxu0 0.0
    %283 = vmatprep.subr.mxu0 0.0
    %284 = vmatpush1.xpose.msra.mxu0 0.0
    %285 = vmatprep.subr.mxu0 0.0
    %286 = vmatpush1.xpose.msra.mxu0 0.0
    %287 = vmatprep.subr.mxu0 0.0
    %288 = vmatpush1.xpose.msra.mxu0 0.0
    %289 = vmatprep.subr.mxu0 0.0
    %290 = vmatpush1.xpose.msra.mxu0 0.0
    %291 = vmatprep.subr.mxu0 0.0
    %292 = vmatpush1.xpose.msra.mxu0 0.0
    %293 = vmatprep.subr.mxu0 0.0
    %294 = vmatpush1.xpose.msra.mxu0 0.0
    %295 = vmatprep.subr.mxu0 0.0
    %296 = vmatpush1.xpose.msra.mxu0 0.0
    %297 = vmatprep.subr.mxu0 0.0
    %298 = vmatpush1.xpose.msra.mxu0 0.0
    %299 = vmatprep.subr.mxu0 0.0
    %300 = vmatpush1.xpose.msra.mxu0 0.0
    %301 = vmatprep.subr.mxu0 0.0
    %302 = vmatpush1.xpose.msra.mxu0 0.0
    %303 = vmatprep.subr.mxu0 0.0
    %304 = vmatpush1.xpose.msra.mxu0 0.0
    %305 = vmatprep.mubr.f32.mxu0 0.0
    %306 = vmatmul.mubr.f32.gmra.mrb[0].mxu0 %v234
    %v307 = vpop.f32.mrb[0].mxu0
    %v308 = vadd.f32 %v239, %v307
    %v309 = vpop.f32.mrb[0].mxu0
    %310 = vdwg.mxu0
    %v311 = vlaneseq
    %v312 = vshrl.u32 %v311, 7
    %vm313 = vcmp.lt.s32.totalorder %v312, 7
    %v314 = vtanh.pop %v308
    %v315 = vsel %vm313, %v314, %v308
    %vm316 = vcmask 31744
    %317 = vst.msk [vmem:[%s7] sm:$0xff] %vm316, %v315
    // Predicated region
    $region38: #{tpu_custom_call.1} parent=1 // pred_check
      _
    $region39: #{tpu_custom_call.1} parent=1 // pred_check_branch
      %319 = sbr.rel (0) target = $region41
    $region40: #{tpu_custom_call.1} parent=1 // pred_region
      _
    $region41: #{tpu_custom_call.1} parent=1 // pred_fallthru
      _
    // Predicated region
    $region42: #{tpu_custom_call.1} parent=1 // pred_check
      _
    $region43: #{tpu_custom_call.1} parent=1 // pred_check_branch
      %321 = sbr.rel (0) target = $region45
    $region44: #{tpu_custom_call.1} parent=1 // pred_region
      _
    $region45: #{tpu_custom_call.1} parent=1 // pred_fallthru
      _
    %322 = vsyncpa [#allocation3], 1
    %323 = vsyncpa [#allocation5], 1

</llo_original>
